<compile_context>
chip_gen: v5e
topology: v5e:2x2
jax: 0.10.0
libtpu: 0.0.40
codegen_flags: <defaults>
</compile_context>

<pallas_src>
import functools
import math

import jax
import jax.numpy as jnp
from jax.experimental import pallas as pl
from jax.experimental.pallas import tpu as pltpu

# fixed-embedding vocabulary sizes, in x_mark column order: month, day, weekday, hour
TEMPORAL_SIZES = (13, 32, 7, 24)
TEMPORAL_OFFSETS = (0, 13, 45, 52)
TW = sum(TEMPORAL_SIZES)          # 76 one-hot columns
LANE = 128


def _round_up(n, m):
    return (n + m - 1) // m * m


# ----------------------------- Pallas kernel --------------------------------
def _pad_lanes(a, width):
    """Zero-pad the last (lane) axis of `a` to `width` (data stays at lanes [0, C))."""
    c = a.shape[-1]
    if c == width:
        return a
    zeros = jnp.zeros(a.shape[:-1] + (width - c,), a.dtype)
    return jnp.concatenate([a, zeros], axis=-1)


def data_embedding_kernel(x_ref, xmark_ref, w_ref, pos_ref, o_ref, *, c_seg, tw_seg):
    # x_ref:     (BB, L, C)   f32
    # xmark_ref: (BB, L, 4)   int32  [month, day, weekday, hour]
    # w_ref:     (K_pad, D)   bf16   [tap0 | tap1 | tap2 | temporal], 128-aligned segments
    # pos_ref:   (L, D)       f32
    # o_ref:     (BB, L, D)   out dtype
    BB, L, C = x_ref.shape
    K_pad, D = w_ref.shape

    xb = x_ref[...]                                    # (BB, L, C) f32
    # circular +-1 shifts along the sequence axis, per batch row (XLU slot)
    xm = pltpu.roll(xb, 1, axis=1)                     # x[t-1]
    xp = pltpu.roll(xb, L - 1, axis=1)                 # x[t+1]  (L-1 == -1 mod L)

    # one-hot temporal indicator in its own 128-lane segment (cols >= 76 never hit).
    # Note: assumes in-range calendar indices (gather reference would clamp OOB).
    marks = xmark_ref[...]                             # (BB, L, 4) int32
    col = jax.lax.broadcasted_iota(jnp.int32, (BB, L, tw_seg), 2)
    hit = col == (marks[:, :, 0:1] + TEMPORAL_OFFSETS[0])
    hit = hit | (col == (marks[:, :, 1:2] + TEMPORAL_OFFSETS[1]))
    hit = hit | (col == (marks[:, :, 2:3] + TEMPORAL_OFFSETS[2]))
    hit = hit | (col == (marks[:, :, 3:4] + TEMPORAL_OFFSETS[3]))
    oh = hit.astype(jnp.float32).astype(jnp.bfloat16)  # (BB, L, 128) exact 0/1

    bf = lambda a: a.astype(jnp.bfloat16)
    feat = jnp.concatenate(
        [_pad_lanes(bf(xm), c_seg),
         _pad_lanes(bf(xb), c_seg),
         _pad_lanes(bf(xp), c_seg),
         oh], axis=-1)                                 # (BB, L, K_pad) bf16, 128-aligned segs

    # single fused MXU pass for the whole block: conv taps + temporal lookup
    y = jnp.dot(feat.reshape(BB * L, K_pad), w_ref[...],
                preferred_element_type=jnp.float32)    # (BB*L, D) f32 accumulation
    y = y.reshape(BB, L, D) + pos_ref[...]             # positional add kept in f32

    # TODO(synk): nn.Dropout(p=0.1) is stochastic in train mode; eval-mode identity here
    # (train mode would be pltpu.prng_seed + pltpu.prng_random_bits + select in-kernel).
    o_ref[...] = y.astype(o_ref.dtype)


# ------------------------------ wrapper --------------------------------------
def _vmem_capacity_bytes():
    try:
        return int(pltpu.get_tpu_info().vmem_capacity_bytes)
    except Exception:
        return 64 * 1024 * 1024        # conservative (v7x-sized) fallback


def _block_bytes_per_row(C, D, k_pad, out_itemsize):
    # per BB*L row: double-buffered streamed blocks + bf16 feature-slab temporaries
    return (2 * D * out_itemsize       # output double buffer
            + 2 * C * 4                # x double buffer (f32)
            + 2 * LANE * 4             # x_mark block (int32, lane-padded 4 -> 128)
            + 2 * k_pad * 2)           # feature slab + padded-tap temps (bf16)


def _pick_batch_block(B, L, C, D, k_pad, out_itemsize, vmem_limit_bytes):
    # ~60% of the scoped VMEM limit for streamed blocks; rest is headroom for the
    # resident (K_pad, D) / (L, D) tiles and compiler temporaries.
    budget = int(vmem_limit_bytes * 0.6)
    per_row = _block_bytes_per_row(C, D, k_pad, out_itemsize)
    max_rows = budget // max(per_row, 1)
    target_rows = min(max_rows, 4096)            # 2-4K rows: long DMAs, MXU-friendly M
    bb = max(1, min(B, target_rows // max(L, 1)))
    if B >= 2:
        bb = min(bb, B // 2)                     # >= 2 grid steps -> both v7x TCs get work
    while B % bb:
        bb -= 1
    return bb


def data_embedding(x, x_mark, conv_weight, temporal_tables, pe_table, *,
                   batch_block=None, out_dtype=None):
    """x: (B, L, C) f32; x_mark: (B, L, 4) int32 [month, day, weekday, hour].

    conv_weight: (D, C, 3) PyTorch Conv1d layout (circular padding, no bias).
    temporal_tables: dict of fixed sinusoidal tables (month/day/weekday/hour).
    pe_table: (max_len, D) positional table.
    out_dtype: output dtype (default x.dtype; pass jnp.bfloat16 to halve writeback).
    """
    B, L, C = x.shape
    D = conv_weight.shape[0]
    assert x_mark.shape == (B, L, 4)
    out_dtype = jnp.dtype(x.dtype) if out_dtype is None else jnp.dtype(out_dtype)

    c_seg = _round_up(C, LANE)
    tw_seg = _round_up(TW, LANE)
    k_pad = 3 * c_seg + tw_seg

    # stacked weight in 128-lane-aligned segments: [tap0 | tap1 | tap2 | temporal]
    w_taps = jnp.transpose(conv_weight, (2, 1, 0)).astype(jnp.float32)       # (3, C, D)
    w_temp = jnp.concatenate(
        [temporal_tables["month"], temporal_tables["day"],
         temporal_tables["weekday"], temporal_tables["hour"]], axis=0)        # (76, D)
    w_stack = jnp.zeros((k_pad, D), jnp.float32)
    for k in range(3):
        w_stack = w_stack.at[k * c_seg:k * c_seg + C, :].set(w_taps[k])
    w_stack = w_stack.at[3 * c_seg:3 * c_seg + TW, :].set(w_temp.astype(jnp.float32))
    w_stack = w_stack.astype(jnp.bfloat16)                                    # MXU-native

    pos = pe_table[:L, :].astype(jnp.float32)                                 # (L, D)

    # per-generation VMEM budget: <=48 MiB on v7x (64 MiB), up to 96 MiB on v5e/v6e (128 MiB)
    vmem_limit = min(_vmem_capacity_bytes() * 3 // 4, 96 * 1024 * 1024)

    if batch_block is None:
        BB = _pick_batch_block(B, L, C, D, k_pad, out_dtype.itemsize, vmem_limit)
    else:
        BB = int(batch_block)
        if BB < 1 or B % BB:
            raise ValueError(f"batch_block={BB} must divide batch size {B}")
        need = BB * L * _block_bytes_per_row(C, D, k_pad, out_dtype.itemsize)
        if need > int(vmem_limit * 0.6):
            raise ValueError(
                f"batch_block={BB} needs ~{need >> 20} MiB of streamed blocks; budget is "
                f"{int(vmem_limit * 0.6) >> 20} MiB (vmem_limit={vmem_limit >> 20} MiB)")
    grid = (B // BB,)

    cost = pl.CostEstimate(
        flops=2 * B * L * k_pad * D,
        transcendentals=0,
        bytes_accessed=(B * L * C * 4 + B * L * 4 * 4 + k_pad * D * 2
                        + L * D * 4 + B * L * D * out_dtype.itemsize),
    )

    kernel = functools.partial(data_embedding_kernel, c_seg=c_seg, tw_seg=tw_seg)

    # Note: L a multiple of 8 keeps the (BB, L) -> BB*L collapse a free sublane relayout.
    out = pl.pallas_call(
        kernel,
        out_shape=jax.ShapeDtypeStruct((B, L, D), out_dtype),
        grid_spec=pltpu.PrefetchScalarGridSpec(
            num_scalar_prefetch=0,
            grid=grid,
            in_specs=[
                pl.BlockSpec((BB, L, C), lambda b: (b, 0, 0)),    # x (f32, small traffic)
                pl.BlockSpec((BB, L, 4), lambda b: (b, 0, 0)),    # x_mark (int32)
                pl.BlockSpec((k_pad, D), lambda b: (0, 0)),       # fused weights (bf16, resident)
                pl.BlockSpec((L, D), lambda b: (0, 0)),           # positional (f32, resident)
            ],
            out_specs=pl.BlockSpec((BB, L, D), lambda b: (b, 0, 0)),
        ),
        compiler_params=pltpu.CompilerParams(
            dimension_semantics=("parallel",),
            vmem_limit_bytes=vmem_limit,
        ),
        cost_estimate=cost,
    )(x.astype(jnp.float32), x_mark.astype(jnp.int32), w_stack, pos)
    return out


# ------------------------- deterministic parameters --------------------------
def sinusoid_table(n, d):
    pos = jnp.arange(n, dtype=jnp.float32)[:, None]
    div = jnp.exp(jnp.arange(0, d, 2, dtype=jnp.float32) * -(math.log(10000.0) / d))
    tab = jnp.zeros((n, d), jnp.float32)
    tab = tab.at[:, 0::2].set(jnp.sin(pos * div))
    tab = tab.at[:, 1::2].set(jnp.cos(pos * div))
    return tab


def make_params(key, c_in, d_model, max_len=5000):
    # Conv1d weight (D, C_in, 3), kaiming_normal fan_in / leaky_relu
    fan_in = c_in * 3
    gain = math.sqrt(2.0)
    std = gain / math.sqrt(fan_in)
    conv_w = std * jax.random.normal(key, (d_model, c_in, 3), dtype=jnp.float32)

    temporal_tables = {
        "month": sinusoid_table(13, d_model),
        "day": sinusoid_table(32, d_model),
        "weekday": sinusoid_table(7, d_model),
        "hour": sinusoid_table(24, d_model),
    }
    pe_table = sinusoid_table(max_len, d_model)
    return conv_w, temporal_tables, pe_table


# ---------------------------- pure-JAX reference ------------------------------
def reference(x, x_mark, conv_w, tt, pe):
    B, L, C = x.shape
    xm = jnp.roll(x, 1, axis=1)
    xp = jnp.roll(x, -1, axis=1)
    y = (xm @ conv_w[:, :, 0].T + x @ conv_w[:, :, 1].T + xp @ conv_w[:, :, 2].T)
    temporal = (tt["hour"][x_mark[:, :, 3]] + tt["weekday"][x_mark[:, :, 2]]
                + tt["day"][x_mark[:, :, 1]] + tt["month"][x_mark[:, :, 0]])
    return y + temporal + pe[None, :L, :]


if __name__ == "__main__":
    B, L, C_IN, D = 2, 8, 4, 32
    key = jax.random.PRNGKey(0)
    k_w, k_x, k_m = jax.random.split(key, 3)

    conv_w, tt, pe = make_params(k_w, C_IN, D)

    x = jax.random.normal(k_x, (B, L, C_IN), dtype=jnp.float32)
    # x_mark columns: [month 0..12, day 0..31, weekday 0..6, hour 0..23]
    km0, km1, km2, km3 = jax.random.split(k_m, 4)
    x_mark = jnp.stack([
        jax.random.randint(km0, (B, L), 0, 13),
        jax.random.randint(km1, (B, L), 0, 32),
        jax.random.randint(km2, (B, L), 0, 7),
        jax.random.randint(km3, (B, L), 0, 24),
    ], axis=-1).astype(jnp.int32)

    out = data_embedding(x, x_mark, conv_w, tt, pe)
    out = jax.block_until_ready(out)
    assert out.shape == (B, L, D)

    # tight check: reference fed the same bf16-quantized matmul operands the kernel streams
    q = lambda a: a.astype(jnp.bfloat16).astype(jnp.float32)
    ref_q = reference(q(x), x_mark, q(conv_w), {k: q(v) for k, v in tt.items()}, pe)
    assert jnp.allclose(out, ref_q, atol=1e-3, rtol=1e-3)

    # loose check vs full-f32 reference (difference = intended bf16 streaming quantization)
    ref = reference(x, x_mark, conv_w, tt, pe)
    assert jnp.allclose(out, ref, atol=1.5e-1, rtol=5e-2)

    print("KERNEL_OK")
</pallas_src>

<mosaic_0001>
module attributes {stable_mosaic.version = 11 : i64} {
  func.func @data_embedding_kernel(%arg0: i32, %arg1: memref<1x8x4xf32, #tpu.memory_space<vmem>>, %arg2: memref<1x8x4xi32, #tpu.memory_space<vmem>>, %arg3: memref<512x32xbf16, #tpu.memory_space<vmem>>, %arg4: memref<8x32xf32, #tpu.memory_space<vmem>>, %arg5: memref<1x8x32xf32, #tpu.memory_space<vmem>>) attributes {dimension_semantics = [#tpu.dimension_semantics<parallel>], iteration_bounds = array<i64: 2>, scalar_prefetch = 0 : i64, scratch_operands = 0 : i64, tpu.core_type = #tpu.core_type<tc>, window_params = [{transform_indices = @transform_0, window_bounds = array<i64: 1, 8, 4>}, {transform_indices = @transform_1, window_bounds = array<i64: 1, 8, 4>}, {pipeline_mode = #tpu.pipeline_mode<synchronous>, transform_indices = @transform_2, window_bounds = array<i64: 512, 32>}, {pipeline_mode = #tpu.pipeline_mode<synchronous>, transform_indices = @transform_3, window_bounds = array<i64: 8, 32>}, {transform_indices = @transform_4, window_bounds = array<i64: 1, 8, 32>}]} {
    %c0 = arith.constant 0 : index
    %c0_0 = arith.constant 0 : index
    %c0_1 = arith.constant 0 : index
    %0 = vector.load %arg1[%c0, %c0_0, %c0_1] : memref<1x8x4xf32, #tpu.memory_space<vmem>>, vector<1x8x4xf32>
    %c1_i32 = arith.constant 1 : i32
    %1 = tpu.dynamic_rotate %0 by %c1_i32 dim 1 : vector<1x8x4xf32>, i32 -> vector<1x8x4xf32>
    %c7_i32 = arith.constant 7 : i32
    %2 = tpu.dynamic_rotate %0 by %c7_i32 dim 1 : vector<1x8x4xf32>, i32 -> vector<1x8x4xf32>
    %c0_2 = arith.constant 0 : index
    %c0_3 = arith.constant 0 : index
    %c0_4 = arith.constant 0 : index
    %3 = vector.load %arg2[%c0_2, %c0_3, %c0_4] : memref<1x8x4xi32, #tpu.memory_space<vmem>>, vector<1x8x4xi32>
    %4 = tpu.iota {dimensions = array<i32: 2>} : vector<1x8x128xi32>
    %5 = vector.extract_strided_slice %3 {offsets = [0, 0, 0], sizes = [1, 8, 1], strides = [1, 1, 1]} : vector<1x8x4xi32> to vector<1x8x1xi32>
    %c0_i32 = arith.constant 0 : i32
    %6 = vector.broadcast %c0_i32 : i32 to vector<1x8x1xi32>
    %7 = arith.addi %5, %6 : vector<1x8x1xi32>
    %8 = vector.broadcast %7 : vector<1x8x1xi32> to vector<1x8x128xi32>
    %9 = arith.cmpi eq, %4, %8 : vector<1x8x128xi32>
    %10 = vector.extract_strided_slice %3 {offsets = [0, 0, 1], sizes = [1, 8, 1], strides = [1, 1, 1]} : vector<1x8x4xi32> to vector<1x8x1xi32>
    %c13_i32 = arith.constant 13 : i32
    %11 = vector.broadcast %c13_i32 : i32 to vector<1x8x1xi32>
    %12 = arith.addi %10, %11 : vector<1x8x1xi32>
    %13 = vector.broadcast %12 : vector<1x8x1xi32> to vector<1x8x128xi32>
    %14 = arith.cmpi eq, %4, %13 : vector<1x8x128xi32>
    %15 = arith.ori %9, %14 : vector<1x8x128xi1>
    %16 = vector.extract_strided_slice %3 {offsets = [0, 0, 2], sizes = [1, 8, 1], strides = [1, 1, 1]} : vector<1x8x4xi32> to vector<1x8x1xi32>
    %c45_i32 = arith.constant 45 : i32
    %17 = vector.broadcast %c45_i32 : i32 to vector<1x8x1xi32>
    %18 = arith.addi %16, %17 : vector<1x8x1xi32>
    %19 = vector.broadcast %18 : vector<1x8x1xi32> to vector<1x8x128xi32>
    %20 = arith.cmpi eq, %4, %19 : vector<1x8x128xi32>
    %21 = arith.ori %15, %20 : vector<1x8x128xi1>
    %22 = vector.extract_strided_slice %3 {offsets = [0, 0, 3], sizes = [1, 8, 1], strides = [1, 1, 1]} : vector<1x8x4xi32> to vector<1x8x1xi32>
    %c52_i32 = arith.constant 52 : i32
    %23 = vector.broadcast %c52_i32 : i32 to vector<1x8x1xi32>
    %24 = arith.addi %22, %23 : vector<1x8x1xi32>
    %25 = vector.broadcast %24 : vector<1x8x1xi32> to vector<1x8x128xi32>
    %26 = arith.cmpi eq, %4, %25 : vector<1x8x128xi32>
    %27 = arith.ori %21, %26 : vector<1x8x128xi1>
    %28 = arith.extui %27 : vector<1x8x128xi1> to vector<1x8x128xi32>
    %29 = arith.sitofp %28 : vector<1x8x128xi32> to vector<1x8x128xf32>
    %30 = arith.truncf %29 : vector<1x8x128xf32> to vector<1x8x128xbf16>
    %31 = arith.truncf %1 : vector<1x8x4xf32> to vector<1x8x4xbf16>
    %cst = arith.constant 0.000000e+00 : bf16
    %32 = vector.broadcast %cst : bf16 to vector<1x8x124xbf16>
    %33 = tpu.concatenate %31, %32 in 2 : vector<1x8x4xbf16>, vector<1x8x124xbf16> -> vector<1x8x128xbf16>
    %34 = arith.truncf %0 : vector<1x8x4xf32> to vector<1x8x4xbf16>
    %cst_5 = arith.constant 0.000000e+00 : bf16
    %35 = vector.broadcast %cst_5 : bf16 to vector<1x8x124xbf16>
    %36 = tpu.concatenate %34, %35 in 2 : vector<1x8x4xbf16>, vector<1x8x124xbf16> -> vector<1x8x128xbf16>
    %37 = arith.truncf %2 : vector<1x8x4xf32> to vector<1x8x4xbf16>
    %cst_6 = arith.constant 0.000000e+00 : bf16
    %38 = vector.broadcast %cst_6 : bf16 to vector<1x8x124xbf16>
    %39 = tpu.concatenate %37, %38 in 2 : vector<1x8x4xbf16>, vector<1x8x124xbf16> -> vector<1x8x128xbf16>
    %40 = tpu.concatenate %33, %36, %39, %30 in 2 : vector<1x8x128xbf16>, vector<1x8x128xbf16>, vector<1x8x128xbf16>, vector<1x8x128xbf16> -> vector<1x8x512xbf16>
    %41 = vector.shape_cast %40 : vector<1x8x512xbf16> to vector<8x512xbf16>
    %c0_7 = arith.constant 0 : index
    %c0_8 = arith.constant 0 : index
    %42 = vector.load %arg3[%c0_7, %c0_8] : memref<512x32xbf16, #tpu.memory_space<vmem>>, vector<512x32xbf16>
    %cst_9 = arith.constant dense<0.000000e+00> : vector<8x32xf32>
    %43 = tpu.matmul %41, %42, %cst_9 {dimension_numbers = #tpu.dot_dimension_numbers<[1], [0], [0], [1], [0, 0, 1, 1], [], []>} : vector<8x512xbf16>, vector<512x32xbf16>, vector<8x32xf32> -> vector<8x32xf32>
    %44 = vector.shape_cast %43 : vector<8x32xf32> to vector<1x8x32xf32>
    %c0_10 = arith.constant 0 : index
    %c0_11 = arith.constant 0 : index
    %45 = vector.load %arg4[%c0_10, %c0_11] : memref<8x32xf32, #tpu.memory_space<vmem>>, vector<8x32xf32>
    %46 = vector.shape_cast %45 : vector<8x32xf32> to vector<1x8x32xf32>
    %47 = arith.addf %44, %46 : vector<1x8x32xf32>
    %c0_12 = arith.constant 0 : index
    %c0_13 = arith.constant 0 : index
    %c0_14 = arith.constant 0 : index
    %48 = vector.load %arg5[%c0_12, %c0_13, %c0_14] : memref<1x8x32xf32, #tpu.memory_space<vmem>>, vector<1x8x32xf32>
    tpu.vector_store %arg5[%c0_12, %c0_13, %c0_14], %47 {strides = array<i32>} : memref<1x8x32xf32, #tpu.memory_space<vmem>>, vector<1x8x32xf32>,
    return
  }
  func.func @transform_0(%arg0: i32) -> (i32, i32, i32) {
    %c0_i32 = arith.constant 0 : i32
    %c0_i32_0 = arith.constant 0 : i32
    %c0_i32_1 = arith.constant 0 : i32
    return %arg0, %c0_i32, %c0_i32_0 : i32, i32, i32
  }
  func.func @transform_1(%arg0: i32) -> (i32, i32, i32) {
    %c0_i32 = arith.constant 0 : i32
    %c0_i32_0 = arith.constant 0 : i32
    %c0_i32_1 = arith.constant 0 : i32
    return %arg0, %c0_i32, %c0_i32_0 : i32, i32, i32
  }
  func.func @transform_2(%arg0: i32) -> (i32, i32) {
    %c0_i32 = arith.constant 0 : i32
    %c0_i32_0 = arith.constant 0 : i32
    %c0_i32_1 = arith.constant 0 : i32
    return %c0_i32, %c0_i32_0 : i32, i32
  }
  func.func @transform_3(%arg0: i32) -> (i32, i32) {
    %c0_i32 = arith.constant 0 : i32
    %c0_i32_0 = arith.constant 0 : i32
    %c0_i32_1 = arith.constant 0 : i32
    return %c0_i32, %c0_i32_0 : i32, i32
  }
  func.func @transform_4(%arg0: i32) -> (i32, i32, i32) {
    %c0_i32 = arith.constant 0 : i32
    %c0_i32_0 = arith.constant 0 : i32
    %c0_i32_1 = arith.constant 0 : i32
    return %arg0, %c0_i32, %c0_i32_0 : i32, i32, i32
  }
}

</mosaic_0001>

<llo_original>
// kernel: tpu_custom_call.1
$region0: #{tpu_custom_call.1}
  #allocation0 [shape = 'u32[]', space=smem, size = 0x4, offset = 0x4, fixed_abs, tag = 'smem constant byte address 0x4 - core index']
  #allocation1 [shape = 'u32[72,128]{1,0:T(1,128)}', space=vmem, size = 0x9000, scoped, tag = 'internal scratch']
  %s0 = inlined_call_operand.vmem [shape: f32[2,8,4], index: 0, kind: input, shape index: {}]
  %s1 = inlined_call_operand.vmem [shape: s32[2,8,4], index: 1, kind: input, shape index: {}]
  %s2 = inlined_call_operand.vmem [shape: bf16[512,32], index: 2, kind: input, shape index: {}]
  %s3 = inlined_call_operand.vmem [shape: f32[8,32], index: 3, kind: input, shape index: {}]
  %s4 = inlined_call_operand.hbm [shape: f32[2,8,32], index: 4, kind: output, shape index: {}]
  %s5 = sld [smem:[#allocation0]]
  $region49: #{tpu_custom_call.1} parent=0
    _
  %s7 = ssub.s32 1, %s5
  %s8 = scalar_select 0, %s7, %s5
  $region1: #{tpu_custom_call.1} parent=0
    #allocation2 [shape = 'u8[8192]{0}', space=vmem, size = 0x2000, scoped, tag = 'output window, operand 0']
    #allocation3 [shape = 's32[2]{0}', space=sflag, size = 0x8, scoped, tag = 'scoped memory for tpu_custom_call.1']
    %9 = vsyncpa [#allocation3], 0
    %s10 = scalar_lea.sflag [#allocation3], 1
    %11 = vsyncpa %s10, 0
    loop: start=0, step=1, limit=4
    $region2: #{tpu_custom_call.1} parent=1 // loop_pre_header
      _
    $region3: #{tpu_custom_call.1} parent=1 // loop_header
      %s13 = sphi 0, %s17
      %p14 = scmp.ge.s32.totalorder %s13, 4
      %s23 = sphi 0, %s25
      %s26 = sphi 0, %s23
      %s27 = sphi 0, %s26
      %s43 = sphi 0, %s27
      %s49 = sphi 0, %s51
      %s52 = sphi 0, %s49
      %s53 = sphi 0, %s52
      %s69 = sphi 0, %s53
      %s73 = sphi 0, %s73
      %s75 = sphi 0, %s73
      %s76 = sphi 0, %s75
      %s90 = sphi 0, %s76
      %s94 = sphi 0, %s94
      %s96 = sphi 0, %s94
      %s97 = sphi 0, %s96
      %s111 = sphi 0, %s97
      %s117 = sphi 0, %s119
      %s120 = sphi 0, %s117
      %s121 = sphi 0, %s120
      %s137 = sphi 0, %s121
    $region4: #{tpu_custom_call.1} parent=1 // loop_header_branch
      %16 = sbr.rel (%p14) target = $region8
    $region5: #{tpu_custom_call.1} parent=1 // loop_body
      %s18 = ssub.s32 %s13, 1
      %s19 = ssub.s32 %s13, 2
      %s20 = sadd.s32 %s13, 1
      %s21 = ssub.s32 %s13, %s20
      %p22 = scmp.eq.s32.totalorder %s21, 0
      %s24 = sadd.s32 %s23, 1
      %s25 = scalar_select %p22, %s23, %s24
      %p28 = pneg %p22
      %p29 = scmp.eq.s32.totalorder %s13, 1
      %p30 = por %p28, %p29
      %p31 = scmp.ne.s32.totalorder %s23, %s26
      %p32 = scmp.eq.s32.totalorder %s13, 0
      %p33 = por %p31, %p32
      %p34 = scmp.ne.s32.totalorder %s23, %s26
      %p35 = scmp.eq.s32.totalorder %s18, 1
      %p36 = por %p34, %p35
      %p37 = scmp.ne.s32.totalorder %s26, %s27
      %p38 = scmp.eq.s32.totalorder %s18, 0
      %p39 = por %p37, %p38
      %p40 = scmp.ne.s32.totalorder %s26, %s27
      %p41 = scmp.eq.s32.totalorder %s19, 1
      %p42 = por %p40, %p41
      %p44 = scmp.ne.s32.totalorder %s27, %s43
      %p45 = scmp.eq.s32.totalorder %s19, 0
      %p46 = por %p44, %p45
      %s47 = ssub.s32 %s13, %s20
      %p48 = scmp.eq.s32.totalorder %s47, 0
      %s50 = sadd.s32 %s49, 1
      %s51 = scalar_select %p48, %s49, %s50
      %p54 = pneg %p48
      %p55 = scmp.eq.s32.totalorder %s13, 1
      %p56 = por %p54, %p55
      %p57 = scmp.ne.s32.totalorder %s49, %s52
      %p58 = scmp.eq.s32.totalorder %s13, 0
      %p59 = por %p57, %p58
      %p60 = scmp.ne.s32.totalorder %s49, %s52
      %p61 = scmp.eq.s32.totalorder %s18, 1
      %p62 = por %p60, %p61
      %p63 = scmp.ne.s32.totalorder %s52, %s53
      %p64 = scmp.eq.s32.totalorder %s18, 0
      %p65 = por %p63, %p64
      %p66 = scmp.ne.s32.totalorder %s52, %s53
      %p67 = scmp.eq.s32.totalorder %s19, 1
      %p68 = por %p66, %p67
      %p70 = scmp.ne.s32.totalorder %s53, %s69
      %p71 = scmp.eq.s32.totalorder %s19, 0
      %p72 = por %p70, %p71
      %s74 = sadd.s32 %s73, 1
      %p77 = scmp.eq.s32.totalorder %s13, 1
      %p78 = scmp.ne.s32.totalorder %s73, %s75
      %p79 = scmp.eq.s32.totalorder %s13, 0
      %p80 = por %p78, %p79
      %p81 = scmp.ne.s32.totalorder %s73, %s75
      %p82 = scmp.eq.s32.totalorder %s18, 1
      %p83 = por %p81, %p82
      %p84 = scmp.ne.s32.totalorder %s75, %s76
      %p85 = scmp.eq.s32.totalorder %s18, 0
      %p86 = por %p84, %p85
      %p87 = scmp.ne.s32.totalorder %s75, %s76
      %p88 = scmp.eq.s32.totalorder %s19, 1
      %p89 = por %p87, %p88
      %p91 = scmp.ne.s32.totalorder %s76, %s90
      %p92 = scmp.eq.s32.totalorder %s19, 0
      %p93 = por %p91, %p92
      %s95 = sadd.s32 %s94, 1
      %p98 = scmp.eq.s32.totalorder %s13, 1
      %p99 = scmp.ne.s32.totalorder %s94, %s96
      %p100 = scmp.eq.s32.totalorder %s13, 0
      %p101 = por %p99, %p100
      %p102 = scmp.ne.s32.totalorder %s94, %s96
      %p103 = scmp.eq.s32.totalorder %s18, 1
      %p104 = por %p102, %p103
      %p105 = scmp.ne.s32.totalorder %s96, %s97
      %p106 = scmp.eq.s32.totalorder %s18, 0
      %p107 = por %p105, %p106
      %p108 = scmp.ne.s32.totalorder %s96, %s97
      %p109 = scmp.eq.s32.totalorder %s19, 1
      %p110 = por %p108, %p109
      %p112 = scmp.ne.s32.totalorder %s97, %s111
      %p113 = scmp.eq.s32.totalorder %s19, 0
      %p114 = por %p112, %p113
      %s115 = ssub.s32 %s13, %s20
      %p116 = scmp.eq.s32.totalorder %s115, 0
      %s118 = sadd.s32 %s117, 1
      %s119 = scalar_select %p116, %s117, %s118
      %p122 = pneg %p116
      %p123 = scmp.eq.s32.totalorder %s13, 1
      %p124 = por %p122, %p123
      %p125 = scmp.ne.s32.totalorder %s117, %s120
      %p126 = scmp.eq.s32.totalorder %s13, 0
      %p127 = por %p125, %p126
      %p128 = scmp.ne.s32.totalorder %s117, %s120
      %p129 = scmp.eq.s32.totalorder %s18, 1
      %p130 = por %p128, %p129
      %p131 = scmp.ne.s32.totalorder %s120, %s121
      %p132 = scmp.eq.s32.totalorder %s18, 0
      %p133 = por %p131, %p132
      %p134 = scmp.ne.s32.totalorder %s120, %s121
      %p135 = scmp.eq.s32.totalorder %s19, 1
      %p136 = por %p134, %p135
      %p138 = scmp.ne.s32.totalorder %s121, %s137
      %p139 = scmp.eq.s32.totalorder %s19, 0
      %p140 = por %p138, %p139
      %p141 = scmp.le.s32.totalorder 1, %s13
      %p142 = scmp.lt.s32.totalorder %s13, 3
      %p143 = pnand %p141, %p142
      %p144 = pneg %p143
      // Predicated region
      $region9: #{tpu_custom_call.1} parent=5 // pred_check
        _
      $region10: #{tpu_custom_call.1} parent=5 // pred_check_branch
        %146 = sbr.rel (%p143) target = $region12
      $region11: #{tpu_custom_call.1} parent=5 // pred_region
        %s147 = ssub.s32 %s13, 1
        // Predicated region
        $region13: #{tpu_custom_call.1} parent=11 // pred_check
          %p148 = pneg %p86
        $region14: #{tpu_custom_call.1} parent=11 // pred_check_branch
          %150 = sbr.rel (%p148) target = $region16
        $region15: #{tpu_custom_call.1} parent=11 // pred_region
          _
        $region16: #{tpu_custom_call.1} parent=11 // pred_fallthru
          _
        // Predicated region
        $region17: #{tpu_custom_call.1} parent=11 // pred_check
          %p151 = pneg %p107
        $region18: #{tpu_custom_call.1} parent=11 // pred_check_branch
          %153 = sbr.rel (%p151) target = $region20
        $region19: #{tpu_custom_call.1} parent=11 // pred_region
          _
        $region20: #{tpu_custom_call.1} parent=11 // pred_fallthru
          _
      $region12: #{tpu_custom_call.1} parent=5 // pred_fallthru
        _
      %p154 = scmp.lt.s32.totalorder %s13, 2
      // Predicated region
      $region21: #{tpu_custom_call.1} parent=5 // pred_check
        %p155 = pneg %p154
      $region22: #{tpu_custom_call.1} parent=5 // pred_check_branch
        %157 = sbr.rel (%p155) target = $region24
      $region23: #{tpu_custom_call.1} parent=5 // pred_region
        // Predicated region
        $region25: #{tpu_custom_call.1} parent=23 // pred_check
          %p158 = pneg %p33
        $region26: #{tpu_custom_call.1} parent=23 // pred_check_branch
          %160 = sbr.rel (%p158) target = $region28
        $region27: #{tpu_custom_call.1} parent=23 // pred_region
          %p161 = scmp.lt.s32.totalorder %s13, 1
          %s162 = scalar_select %p161, %s13, 1
          %s163 = smul.addr %s162, 8
          %s164 = scalar_lea.vmem %s0, %s163
        $region28: #{tpu_custom_call.1} parent=23 // pred_fallthru
          _
        // Predicated region
        $region29: #{tpu_custom_call.1} parent=23 // pred_check
          %p165 = pneg %p59
        $region30: #{tpu_custom_call.1} parent=23 // pred_check_branch
          %167 = sbr.rel (%p165) target = $region32
        $region31: #{tpu_custom_call.1} parent=23 // pred_region
          %p168 = scmp.lt.s32.totalorder %s13, 1
          %s169 = scalar_select %p168, %s13, 1
          %s170 = smul.addr %s169, 8
          %s171 = scalar_lea.vmem %s1, %s170
        $region32: #{tpu_custom_call.1} parent=23 // pred_fallthru
          _
      $region24: #{tpu_custom_call.1} parent=5 // pred_fallthru
        _
      %p172 = scmp.le.s32.totalorder 1, %s13
      %p173 = scmp.lt.s32.totalorder %s13, 3
      %p174 = pnand %p172, %p173
      %p175 = pneg %p174
      // Predicated region
      $region33: #{tpu_custom_call.1} parent=5 // pred_check
        _
      $region34: #{tpu_custom_call.1} parent=5 // pred_check_branch
        %177 = sbr.rel (%p174) target = $region36
      $region35: #{tpu_custom_call.1} parent=5 // pred_region
        %s178 = ssub.s32 %s13, 1
        %p179 = scmp.lt.s32.totalorder %s18, 1
        %s180 = scalar_select %p179, %s18, 1
        %s181 = smul.addr %s180, 8
        %s182 = scalar_lea.vmem %s0, %s181
        %p183 = pneg %p39
        %p184 = pneg %p36
        %p185 = scmp.lt.s32.totalorder %s18, 1
        %s186 = scalar_select %p185, %s18, 1
        %s187 = smul.addr %s186, 8
        %s188 = scalar_lea.vmem %s1, %s187
        %p189 = pneg %p65
        %p190 = pneg %p62
        %p191 = pneg %p86
        %p192 = pneg %p83
        %p193 = pneg %p107
        %p194 = pneg %p104
        %p195 = pneg %p133
        %p196 = pneg %p130
        %s197 = sand.u32 %s120, 1
        %s198 = scalar_lea.sflag [#allocation3], %s197
        %s199 = sand.u32 %s120, 1
        %s200 = smul.addr %s199, 8
        %s201 = scalar_lea.vmem [#allocation2], %s200
        %p202 = scmp.lt.s32.totalorder %s18, 1
        %s203 = scalar_select %p202, %s18, 1
        %s204 = smul.addr %s203, 8
        %s205 = scalar_lea.vmem %s0, %s204
        %p206 = scmp.lt.s32.totalorder %s18, 1
        %s207 = scalar_select %p206, %s18, 1
        %s208 = smul.addr %s207, 8
        %s209 = scalar_lea.vmem %s1, %s208
        %v211 = vld [vmem:[%s205] sm:$0xff]
        %v212 = vrot.slane %v211, 7
        %v213 = vrot.slane %v211, 1
        %v214 = vld [vmem:[%s209] sm:$0xff]
        %v215 = vlaneseq
        %v216 = vand.u32 %v215, 127
        %217 = vset.pattern.permute.xlu0 0
        %218 = vperm.xlu0 %217, %v214
        %v219 = vpop.permute.xlu0 %218
        %vm220 = vcmp.eq.s32.totalorder %v216, %v219
        %v221 = vadd.s32 %v214, 13
        %222 = vset.pattern.permute.xlu0 1
        %223 = vperm.xlu0 %222, %v221
        %v224 = vpop.permute.xlu0 %223
        %vm225 = vcmp.eq.s32.totalorder %v216, %v224
        %vm226 = vmor %vm220, %vm225
        %v227 = vadd.s32 %v214, 45
        %228 = vset.pattern.permute.xlu0 2
        %229 = vperm.xlu0 %228, %v227
        %v230 = vpop.permute.xlu0 %229
        %vm231 = vcmp.eq.s32.totalorder %v216, %v230
        %vm232 = vmor %vm226, %vm231
        %v233 = vadd.s32 %v214, 52
        %234 = vset.pattern.permute.xlu0 3
        %235 = vperm.xlu0 %234, %v233
        %v236 = vpop.permute.xlu0 %235
        %vm237 = vcmp.eq.s32.totalorder %v216, %v236
        %vm238 = vmor %vm232, %vm237
        %v239 = vsel %vm238, 1, 0
        %v240 = vcvt.s32.f32 %v239
        %v241 = vpack.c.bf16 %v240, %v240
        %v242 = vpack.c.bf16 %v212, %v212
        %vm243 = vcmask 31744
        %v246 = vsel %vm243, %v242, 0
        %v248 = vpack.c.bf16 %v211, %v211
        %v250 = vsel %vm243, %v248, 0
        %v252 = vpack.c.bf16 %v213, %v213
        %v254 = vsel %vm243, %v252, 0
        %v256 = vld [vmem:[%s2] sm:$0xf]
        %v257 = vld [vmem:[%s2 + $0x4] sm:$0xf]
        %v258 = vld [vmem:[%s2 + $0x8] sm:$0xf]
        %v259 = vld [vmem:[%s2 + $0xc] sm:$0xf]
        %v260 = vld [vmem:[%s2 + $0x10] sm:$0xf]
        %v261 = vld [vmem:[%s2 + $0x14] sm:$0xf]
        %v262 = vld [vmem:[%s2 + $0x18] sm:$0xf]
        %v263 = vld [vmem:[%s2 + $0x1c] sm:$0xf]
        %v264 = vld [vmem:[%s2 + $0x20] sm:$0xf]
        %v265 = vld [vmem:[%s2 + $0x24] sm:$0xf]
        %v266 = vld [vmem:[%s2 + $0x28] sm:$0xf]
        %v267 = vld [vmem:[%s2 + $0x2c] sm:$0xf]
        %v268 = vld [vmem:[%s2 + $0x30] sm:$0xf]
        %v269 = vld [vmem:[%s2 + $0x34] sm:$0xf]
        %v270 = vld [vmem:[%s2 + $0x38] sm:$0xf]
        %v271 = vld [vmem:[%s2 + $0x3c] sm:$0xf]
        %v272 = vld [vmem:[%s2 + $0x40] sm:$0xf]
        %v273 = vld [vmem:[%s2 + $0x44] sm:$0xf]
        %v274 = vld [vmem:[%s2 + $0x48] sm:$0xf]
        %v275 = vld [vmem:[%s2 + $0x4c] sm:$0xf]
        %v276 = vld [vmem:[%s2 + $0x50] sm:$0xf]
        %v277 = vld [vmem:[%s2 + $0x54] sm:$0xf]
        %v278 = vld [vmem:[%s2 + $0x58] sm:$0xf]
        %v279 = vld [vmem:[%s2 + $0x5c] sm:$0xf]
        %v280 = vld [vmem:[%s2 + $0x60] sm:$0xf]
        %v281 = vld [vmem:[%s2 + $0x64] sm:$0xf]
        %v282 = vld [vmem:[%s2 + $0x68] sm:$0xf]
        %v283 = vld [vmem:[%s2 + $0x6c] sm:$0xf]
        %v284 = vld [vmem:[%s2 + $0x70] sm:$0xf]
        %v285 = vld [vmem:[%s2 + $0x74] sm:$0xf]
        %v286 = vld [vmem:[%s2 + $0x78] sm:$0xf]
        %v287 = vld [vmem:[%s2 + $0x7c] sm:$0xf]
        %v288 = vld [vmem:[%s2 + $0x80] sm:$0xf]
        %v289 = vld [vmem:[%s2 + $0x84] sm:$0xf]
        %v290 = vld [vmem:[%s2 + $0x88] sm:$0xf]
        %v291 = vld [vmem:[%s2 + $0x8c] sm:$0xf]
        %v292 = vld [vmem:[%s2 + $0x90] sm:$0xf]
        %v293 = vld [vmem:[%s2 + $0x94] sm:$0xf]
        %v294 = vld [vmem:[%s2 + $0x98] sm:$0xf]
        %v295 = vld [vmem:[%s2 + $0x9c] sm:$0xf]
        %v296 = vld [vmem:[%s2 + $0xa0] sm:$0xf]
        %v297 = vld [vmem:[%s2 + $0xa4] sm:$0xf]
        %v298 = vld [vmem:[%s2 + $0xa8] sm:$0xf]
        %v299 = vld [vmem:[%s2 + $0xac] sm:$0xf]
        %v300 = vld [vmem:[%s2 + $0xb0] sm:$0xf]
        %v301 = vld [vmem:[%s2 + $0xb4] sm:$0xf]
        %v302 = vld [vmem:[%s2 + $0xb8] sm:$0xf]
        %v303 = vld [vmem:[%s2 + $0xbc] sm:$0xf]
        %v304 = vld [vmem:[%s2 + $0xc0] sm:$0xf]
        %v305 = vld [vmem:[%s2 + $0xc4] sm:$0xf]
        %v306 = vld [vmem:[%s2 + $0xc8] sm:$0xf]
        %v307 = vld [vmem:[%s2 + $0xcc] sm:$0xf]
        %v308 = vld [vmem:[%s2 + $0xd0] sm:$0xf]
        %v309 = vld [vmem:[%s2 + $0xd4] sm:$0xf]
        %v310 = vld [vmem:[%s2 + $0xd8] sm:$0xf]
        %v311 = vld [vmem:[%s2 + $0xdc] sm:$0xf]
        %v312 = vld [vmem:[%s2 + $0xe0] sm:$0xf]
        %v313 = vld [vmem:[%s2 + $0xe4] sm:$0xf]
        %v314 = vld [vmem:[%s2 + $0xe8] sm:$0xf]
        %v315 = vld [vmem:[%s2 + $0xec] sm:$0xf]
        %v316 = vld [vmem:[%s2 + $0xf0] sm:$0xf]
        %v317 = vld [vmem:[%s2 + $0xf4] sm:$0xf]
        %v318 = vld [vmem:[%s2 + $0xf8] sm:$0xf]
        %v319 = vld [vmem:[%s2 + $0xfc] sm:$0xf]
        %v384 = vunpack.c.l.b16 %v256
        %v385 = vunpack.c.l.b16 %v257
        %v386 = vunpack.c.l.b16 %v258
        %v387 = vunpack.c.l.b16 %v259
        %v388 = vunpack.c.l.b16 %v260
        %v389 = vunpack.c.l.b16 %v261
        %v390 = vunpack.c.l.b16 %v262
        %v391 = vunpack.c.l.b16 %v263
        %v392 = vunpack.c.l.b16 %v264
        %v393 = vunpack.c.l.b16 %v265
        %v394 = vunpack.c.l.b16 %v266
        %v395 = vunpack.c.l.b16 %v267
        %v396 = vunpack.c.l.b16 %v268
        %v397 = vunpack.c.l.b16 %v269
        %v398 = vunpack.c.l.b16 %v270
        %v399 = vunpack.c.l.b16 %v271
        %v400 = vunpack.c.l.b16 %v272
        %v401 = vunpack.c.l.b16 %v273
        %v402 = vunpack.c.l.b16 %v274
        %v403 = vunpack.c.l.b16 %v275
        %v404 = vunpack.c.l.b16 %v276
        %v405 = vunpack.c.l.b16 %v277
        %v406 = vunpack.c.l.b16 %v278
        %v407 = vunpack.c.l.b16 %v279
        %v408 = vunpack.c.l.b16 %v280
        %v409 = vunpack.c.l.b16 %v281
        %v410 = vunpack.c.l.b16 %v282
        %v411 = vunpack.c.l.b16 %v283
        %v412 = vunpack.c.l.b16 %v284
        %v413 = vunpack.c.l.b16 %v285
        %v414 = vunpack.c.l.b16 %v286
        %v415 = vunpack.c.l.b16 %v287
        %v416 = vunpack.c.l.b16 %v288
        %v417 = vunpack.c.l.b16 %v289
        %v418 = vunpack.c.l.b16 %v290
        %v419 = vunpack.c.l.b16 %v291
        %v420 = vunpack.c.l.b16 %v292
        %v421 = vunpack.c.l.b16 %v293
        %v422 = vunpack.c.l.b16 %v294
        %v423 = vunpack.c.l.b16 %v295
        %v424 = vunpack.c.l.b16 %v296
        %v425 = vunpack.c.l.b16 %v297
        %v426 = vunpack.c.l.b16 %v298
        %v427 = vunpack.c.l.b16 %v299
        %v428 = vunpack.c.l.b16 %v300
        %v429 = vunpack.c.l.b16 %v301
        %v430 = vunpack.c.l.b16 %v302
        %v431 = vunpack.c.l.b16 %v303
        %v432 = vunpack.c.l.b16 %v304
        %v433 = vunpack.c.l.b16 %v305
        %v434 = vunpack.c.l.b16 %v306
        %v435 = vunpack.c.l.b16 %v307
        %v436 = vunpack.c.l.b16 %v308
        %v437 = vunpack.c.l.b16 %v309
        %v438 = vunpack.c.l.b16 %v310
        %v439 = vunpack.c.l.b16 %v311
        %v440 = vunpack.c.l.b16 %v312
        %v441 = vunpack.c.l.b16 %v313
        %v442 = vunpack.c.l.b16 %v314
        %v443 = vunpack.c.l.b16 %v315
        %v444 = vunpack.c.l.b16 %v316
        %v445 = vunpack.c.l.b16 %v317
        %v446 = vunpack.c.l.b16 %v318
        %v447 = vunpack.c.l.b16 %v319
        %v448 = vpack.c.b16 %v385, %v384
        %v449 = vpack.c.b16 %v387, %v386
        %v450 = vpack.c.b16 %v389, %v388
        %v451 = vpack.c.b16 %v391, %v390
        %v452 = vpack.c.b16 %v393, %v392
        %v453 = vpack.c.b16 %v395, %v394
        %v454 = vpack.c.b16 %v397, %v396
        %v455 = vpack.c.b16 %v399, %v398
        %v456 = vpack.c.b16 %v401, %v400
        %v457 = vpack.c.b16 %v403, %v402
        %v458 = vpack.c.b16 %v405, %v404
        %v459 = vpack.c.b16 %v407, %v406
        %v460 = vpack.c.b16 %v409, %v408
        %v461 = vpack.c.b16 %v411, %v410
        %v462 = vpack.c.b16 %v413, %v412
        %v463 = vpack.c.b16 %v415, %v414
        %v464 = vpack.c.b16 %v417, %v416
        %v465 = vpack.c.b16 %v419, %v418
        %v466 = vpack.c.b16 %v421, %v420
        %v467 = vpack.c.b16 %v423, %v422
        %v468 = vpack.c.b16 %v425, %v424
        %v469 = vpack.c.b16 %v427, %v426
        %v470 = vpack.c.b16 %v429, %v428
        %v471 = vpack.c.b16 %v431, %v430
        %v472 = vpack.c.b16 %v433, %v432
        %v473 = vpack.c.b16 %v435, %v434
        %v474 = vpack.c.b16 %v437, %v436
        %v475 = vpack.c.b16 %v439, %v438
        %v476 = vpack.c.b16 %v441, %v440
        %v477 = vpack.c.b16 %v443, %v442
        %v478 = vpack.c.b16 %v445, %v444
        %v479 = vpack.c.b16 %v447, %v446
        %512 = vmatpush.bf16.msra.mxu0 %v455
        %513 = vmatpush.bf16.msra.mxu0 %v454
        %514 = vmatpush.bf16.msra.mxu0 %v453
        %515 = vmatpush.bf16.msra.mxu0 %v452
        %516 = vmatpush.bf16.msra.mxu0 %v451
        %517 = vmatpush.bf16.msra.mxu0 %v450
        %518 = vmatpush.bf16.msra.mxu0 %v449
        %519 = vmatpush.bf16.msra.mxu0 %v448
        %520 = vmatmul.bf16.gmra.mxu0 %v246
        %v521 = vpop.f32.mrf.mxu0
        %v522 = vadd.f32 0.0, %v521
        %v523 = vpop.f32.mrf.mxu0
        %524 = vdwg.mxu0
        %525 = vmatpush.bf16.msra.mxu0 %v463
        %526 = vmatpush.bf16.msra.mxu0 %v462
        %527 = vmatpush.bf16.msra.mxu0 %v461
        %528 = vmatpush.bf16.msra.mxu0 %v460
        %529 = vmatpush.bf16.msra.mxu0 %v459
        %530 = vmatpush.bf16.msra.mxu0 %v458
        %531 = vmatpush.bf16.msra.mxu0 %v457
        %532 = vmatpush.bf16.msra.mxu0 %v456
        %533 = vmatmul.bf16.gmra.mxu0 %v250
        %v534 = vpop.f32.mrf.mxu0
        %v535 = vadd.f32 %v522, %v534
        %v536 = vpop.f32.mrf.mxu0
        %537 = vdwg.mxu0
        %538 = vmatpush.bf16.msra.mxu0 %v471
        %539 = vmatpush.bf16.msra.mxu0 %v470
        %540 = vmatpush.bf16.msra.mxu0 %v469
        %541 = vmatpush.bf16.msra.mxu0 %v468
        %542 = vmatpush.bf16.msra.mxu0 %v467
        %543 = vmatpush.bf16.msra.mxu0 %v466
        %544 = vmatpush.bf16.msra.mxu0 %v465
        %545 = vmatpush.bf16.msra.mxu0 %v464
        %546 = vmatmul.bf16.gmra.mxu0 %v254
        %v547 = vpop.f32.mrf.mxu0
        %v548 = vadd.f32 %v535, %v547
        %v549 = vpop.f32.mrf.mxu0
        %550 = vdwg.mxu0
        %551 = vmatpush.bf16.msra.mxu0 %v479
        %552 = vmatpush.bf16.msra.mxu0 %v478
        %553 = vmatpush.bf16.msra.mxu0 %v477
        %554 = vmatpush.bf16.msra.mxu0 %v476
        %555 = vmatpush.bf16.msra.mxu0 %v475
        %556 = vmatpush.bf16.msra.mxu0 %v474
        %557 = vmatpush.bf16.msra.mxu0 %v473
        %558 = vmatpush.bf16.msra.mxu0 %v472
        %559 = vmatmul.bf16.gmra.mxu0 %v241
        %v560 = vpop.f32.mrf.mxu0
        %v561 = vadd.f32 %v548, %v560
        %v562 = vpop.f32.mrf.mxu0
        %563 = vdwg.mxu0
        %v564 = vld [vmem:[%s3] sm:$0xff]
        %v565 = vadd.f32 %v561, %v564
        %vm566 = vcmask 261120
        %567 = vst.msk [vmem:[%s201] sm:$0xff] %vm566, %v565
        %s568 = sand.u32 %s120, 1
        %s569 = scalar_lea.sflag [#allocation3], %s568
        %s570 = sand.u32 %s120, 1
        %s571 = smul.addr %s570, 8
        %s572 = scalar_lea.vmem [#allocation2], %s571
        // Predicated region
        $region37: #{tpu_custom_call.1} parent=35 // pred_check
          %p573 = pneg %p130
        $region38: #{tpu_custom_call.1} parent=35 // pred_check_branch
          %575 = sbr.rel (%p573) target = $region40
        $region39: #{tpu_custom_call.1} parent=35 // pred_region
          %577 = vsyncadd %s569, 0
          %s578 = smul.addr %s18, 8
          %s579 = scalar_lea.hbm %s4, %s578
          %s581 = sshll.u32 %s572, 4
          %s582 = int_to_ptr.vmem [resolvable:$true] %s581
          %s583 = sshll.u32 %s579, 4
          %s584 = int_to_ptr.hbm [resolvable:$true] %s583
          %586 = dma.vmem_to_hbm [thread:$0]  %s582, 128, %s584, %s569
        $region40: #{tpu_custom_call.1} parent=35 // pred_fallthru
          _
      $region36: #{tpu_custom_call.1} parent=5 // pred_fallthru
        _
      %p587 = scmp.le.s32.totalorder 2, %s13
      // Predicated region
      $region41: #{tpu_custom_call.1} parent=5 // pred_check
        %p588 = pneg %p587
      $region42: #{tpu_custom_call.1} parent=5 // pred_check_branch
        %590 = sbr.rel (%p588) target = $region44
      $region43: #{tpu_custom_call.1} parent=5 // pred_region
        %s591 = ssub.s32 %s13, 2
        // Predicated region
        $region45: #{tpu_custom_call.1} parent=43 // pred_check
          %p592 = pneg %p136
        $region46: #{tpu_custom_call.1} parent=43 // pred_check_branch
          %594 = sbr.rel (%p592) target = $region48
        $region47: #{tpu_custom_call.1} parent=43 // pred_region
          %s595 = sand.u32 %s121, 1
          %s596 = scalar_lea.sflag [#allocation3], %s595
          %s597 = sand.u32 %s121, 1
          %s598 = smul.addr %s597, 8
          %s599 = scalar_lea.vmem [#allocation2], %s598
          %601 = dma.done %s596, 128
        $region48: #{tpu_custom_call.1} parent=43 // pred_fallthru
          _
      $region44: #{tpu_custom_call.1} parent=5 // pred_fallthru
        _
    $region6: #{tpu_custom_call.1} parent=1 // loop_footer
      %s17 = sadd.s32 1, %s13
    $region7: #{tpu_custom_call.1} parent=1 // loop_footer_branch
      %12 = sbr.rel target = $region3
    $region8: #{tpu_custom_call.1} parent=1 // loop_exit
      _
    %602 = vsyncpa [#allocation3], 1
    %s603 = scalar_lea.sflag [#allocation3], 1
    %604 = vsyncpa %s603, 1

</llo_original>
